<compile_context>
chip_gen: v7x
topology: tpu7x:2x2x1
jax: 0.10.0
libtpu: 0.0.40
codegen_flags: <defaults>
</compile_context>

<pallas_src>
import functools

import jax
import jax.numpy as jnp
from jax.experimental import pallas as pl
from jax.experimental.pallas import tpu as pltpu


def _round_up(x: int, m: int) -> int:
    return ((x + m - 1) // m) * m


def _make_linear_kernel(has_bias: bool, x_resident: bool, tk: int):
    def kernel(*refs):
        if has_bias:
            x_ref, w_ref, b_ref, o_ref, acc_ref = refs
        else:
            x_ref, w_ref, o_ref, acc_ref = refs
            b_ref = None

        k = pl.program_id(2)

        if x_resident:
            # x row-panel (tm, Kp) is resident; slice the current K tile.
            start = pl.multiple_of(k * tk, tk)
            x_tile = x_ref[:, pl.ds(start, tk)]
        else:
            x_tile = x_ref[...]

        prod = jnp.dot(x_tile, w_ref[...], preferred_element_type=jnp.float32)

        @pl.when(k == 0)
        def _init():
            acc_ref[...] = prod          # init with first partial product

        @pl.when(k > 0)
        def _accum():
            acc_ref[...] += prod

        @pl.when(k == pl.num_programs(2) - 1)
        def _finalize():
            out = acc_ref[...]
            if has_bias:
                out = out + b_ref[...].astype(jnp.float32)
            o_ref[...] = out.astype(o_ref.dtype)

    return kernel


def _k_tiling(K: int, tk_max: int):
    assert tk_max % 128 == 0
    if K <= tk_max:
        return K, K                    # full-K block; no padding needed at all
    Kp = _round_up(K, tk_max)
    return tk_max, Kp


def prepare_linear_params(weight, bias=None, *, compute_dtype=jnp.bfloat16,
                          tk_max: int = 1024):
    """One-time prep of PyTorch-style nn.Linear params.

    weight: (N, K)   bias: (N,) or None
    Returns a dict holding the transposed / cast / K-padded weight so the
    per-call forward never re-pads or re-casts the (static) weight.
    """
    weight = jnp.asarray(weight)
    N, K = weight.shape
    tk, Kp = _k_tiling(int(K), tk_max)
    w_t = jnp.transpose(weight).astype(compute_dtype)            # (K, N)
    if Kp != K:
        w_t = jnp.pad(w_t, ((0, Kp - K), (0, 0)))                # real zeros
    b = None if bias is None else jnp.asarray(bias, jnp.float32).reshape(1, N)
    return {"weight_t": w_t, "bias": b, "K": int(K), "tk": int(tk)}


@functools.partial(
    jax.jit,
    static_argnames=("tm", "tn", "tk", "x_resident", "weight_buffers",
                     "out_dtype"),
)
def _pallas_linear(x_p, w_t, bias, *, tm, tn, tk, x_resident, weight_buffers,
                   out_dtype):
    M, Kp = x_p.shape
    _, N = w_t.shape
    has_bias = bias is not None
    cdt = w_t.dtype
    in_isz = jnp.dtype(cdt).itemsize
    out_isz = jnp.dtype(out_dtype).itemsize

    grid_m = pl.cdiv(M, tm)
    grid_n = pl.cdiv(N, tn)
    nk = Kp // tk
    grid = (grid_m, grid_n, nk)

    if x_resident:
        x_spec = pl.BlockSpec((tm, Kp), lambda i, j, k: (i, 0))
    else:
        x_spec = pl.BlockSpec((tm, tk), lambda i, j, k: (i, k))

    w_map = lambda i, j, k: (k, j)
    if weight_buffers > 2:
        # Deeper weight pipelining (useful on v5e if the weight DMA is exposed).
        w_spec = pl.BlockSpec((tk, tn), w_map,
                              pipeline_mode=pl.Buffered(weight_buffers))
    else:
        w_spec = pl.BlockSpec((tk, tn), w_map)

    in_specs = [x_spec, w_spec]
    args = (x_p, w_t)
    if has_bias:
        in_specs.append(pl.BlockSpec((1, tn), lambda i, j, k: (0, j)))
        args = args + (bias,)

    # VMEM budget from the actual tile footprint (double-buffered inputs and
    # outputs + f32 accumulator), capped well below v7x's 64 MiB physical VMEM.
    x_block = tm * (Kp if x_resident else tk) * in_isz
    w_block = tk * tn * in_isz
    b_block = tn * 4 if has_bias else 0
    o_block = tm * tn * out_isz
    tile_bytes = (2 * x_block + max(2, weight_buffers) * w_block
                  + 2 * b_block + 2 * o_block + tm * tn * 4)
    vmem_limit = int(min(48 * 2**20,
                         max(8 * 2**20, int(1.5 * tile_bytes) + (1 << 20))))

    # Advisory cost: count real streamed bytes including re-reads.
    x_reads = 1 if (x_resident or nk == 1) else grid_n
    cost = pl.CostEstimate(
        flops=2 * M * Kp * N,
        transcendentals=0,
        bytes_accessed=int(
            x_reads * grid_m * tm * Kp * in_isz        # x stream (+ re-reads)
            + grid_m * Kp * grid_n * tn * in_isz       # weight re-read per M tile
            + (grid_m * grid_n * tn * 4 if has_bias else 0)
            + grid_m * tm * grid_n * tn * out_isz      # output writeback
        ),
    )

    kernel = _make_linear_kernel(has_bias, x_resident, tk)
    return pl.pallas_call(
        kernel,
        out_shape=jax.ShapeDtypeStruct((M, N), out_dtype),
        grid_spec=pltpu.PrefetchScalarGridSpec(
            num_scalar_prefetch=0,
            grid=grid,
            in_specs=in_specs,
            out_specs=pl.BlockSpec((tm, tn), lambda i, j, k: (i, j)),
            scratch_shapes=[pltpu.VMEM((tm, tn), jnp.float32)],
        ),
        compiler_params=pltpu.CompilerParams(
            dimension_semantics=("parallel", "parallel", "arbitrary"),
            vmem_limit_bytes=vmem_limit,
        ),
        cost_estimate=cost,
    )(*args)


def linear_forward(x, params, *, tm_max: int = 256, tn_max: int = 256,
                   xla_fastpath: bool = True, fastpath_max_flops: int = 1 << 21,
                   weight_buffers: int = 2):
    """y = x @ W^T + b with params from prepare_linear_params (W: (N, K))."""
    w_t = params["weight_t"]
    bias = params["bias"]
    K = params["K"]
    tk = params["tk"]
    Kp, N = w_t.shape
    cdt = w_t.dtype

    x = jnp.asarray(x)
    out_dtype = x.dtype
    lead = x.shape[:-1]
    assert x.shape[-1] == K, f"expected last dim {K}, got {x.shape[-1]}"
    x2 = x.reshape(-1, K)
    M = x2.shape[0]

    # Tiny problems: pallas_call fixed overhead dominates -> plain XLA dot.
    if xla_fastpath and 2 * M * K * N <= fastpath_max_flops:
        y = jnp.dot(x2.astype(cdt), w_t[:K, :],
                    preferred_element_type=jnp.float32)
        if bias is not None:
            y = y + bias
        return y.astype(out_dtype).reshape(*lead, N)

    x_c = x2 if x2.dtype == cdt else x2.astype(cdt)
    if Kp != K:        # only x needs per-call K padding; weight padded once
        x_c = jnp.pad(x_c, ((0, 0), (0, Kp - K)))

    in_isz = jnp.dtype(cdt).itemsize
    sub = {1: 32, 2: 16}.get(in_isz, 8)            # packed-sublane multiple
    tm = max(sub, (min(tm_max, _round_up(M, sub)) // sub) * sub)
    tn = N if N <= tn_max else (tn_max // 128) * 128
    nk = Kp // tk
    # Hold the x row-panel resident across the N grid axis whenever it fits a
    # modest slice of VMEM (removes all x re-reads from HBM).
    x_resident = nk > 1 and 2 * tm * Kp * in_isz <= 16 * 2**20

    y = _pallas_linear(
        x_c, w_t, bias,
        tm=int(tm), tn=int(tn), tk=int(tk),
        x_resident=bool(x_resident),
        weight_buffers=int(weight_buffers),
        out_dtype=jnp.dtype(out_dtype),
    )
    return y.reshape(*lead, N)


if __name__ == "__main__":
    key = jax.random.PRNGKey(0)

    # --- Check 1: shapes consistent with the module (insize=32, outsize=64),
    #     bf16 compute path (default), Pallas forced (fast path disabled). ---
    batch, insize, outsize = 16, 32, 64
    kx, kw, kb, k2 = jax.random.split(key, 4)
    bound = 1.0 / jnp.sqrt(jnp.float32(insize))
    weight = jax.random.uniform(kw, (outsize, insize), jnp.float32, -bound, bound)
    bias = jax.random.uniform(kb, (outsize,), jnp.float32, -bound, bound)
    x = jax.random.normal(kx, (batch, insize), jnp.float32)

    params_bf16 = prepare_linear_params(weight, bias)   # bf16 compute default
    y = jax.block_until_ready(linear_forward(x, params_bf16, xla_fastpath=False))
    y_ref = x @ weight.T + bias
    assert y.shape == (batch, outsize)
    assert jnp.allclose(y, y_ref, atol=3e-2, rtol=3e-2)  # bf16 MXU, f32 acc

    # --- Check 2: non-tile-multiple shapes (ragged M grid block + masked
    #     output stores), f32 compute for a tight-tolerance comparison. ---
    M2, K2, N2 = 300, 192, 200
    kx2, kw2, kb2 = jax.random.split(k2, 3)
    bound2 = 1.0 / jnp.sqrt(jnp.float32(K2))
    weight2 = jax.random.uniform(kw2, (N2, K2), jnp.float32, -bound2, bound2)
    bias2 = jax.random.uniform(kb2, (N2,), jnp.float32, -bound2, bound2)
    x2 = jax.random.normal(kx2, (M2, K2), jnp.float32)

    params_f32 = prepare_linear_params(weight2, bias2, compute_dtype=jnp.float32)
    y2 = jax.block_until_ready(linear_forward(x2, params_f32, xla_fastpath=False))
    y2_ref = x2 @ weight2.T + bias2
    assert y2.shape == (M2, N2)
    assert jnp.allclose(y2, y2_ref, atol=1e-4, rtol=1e-4)

    # --- Check 3: force a multi-step K reduction + resident x row-panel
    #     (tk_max < K -> weight K-padded once at prep, x K-padded per call). ---
    params_kt = prepare_linear_params(weight2, bias2, compute_dtype=jnp.float32,
                                      tk_max=128)
    y3 = jax.block_until_ready(linear_forward(x2, params_kt, xla_fastpath=False))
    assert jnp.allclose(y3, y2_ref, atol=1e-4, rtol=1e-4)

    # --- Check 4: statically bias-free kernel (no bias DMA / add pass). ---
    params_nb = prepare_linear_params(weight2, None, compute_dtype=jnp.float32)
    y4 = jax.block_until_ready(linear_forward(x2, params_nb, xla_fastpath=False))
    assert jnp.allclose(y4, x2 @ weight2.T, atol=1e-4, rtol=1e-4)

    # TODO(synk): reg_error() of slim.Linear is a training-time regularizer,
    # not part of forward(); omitted.
    print("KERNEL_OK")
</pallas_src>

<mosaic_0001>
module attributes {stable_mosaic.version = 11 : i64} {
  func.func @kernel(%arg0: i32, %arg1: i32, %arg2: i32, %arg3: memref<16x32xbf16, #tpu.memory_space<vmem>>, %arg4: memref<32x64xbf16, #tpu.memory_space<vmem>>, %arg5: memref<1x64xf32, #tpu.memory_space<vmem>>, %arg6: memref<16x64xf32, #tpu.memory_space<vmem>>, %arg7: memref<16x64xf32, #tpu.memory_space<vmem>>) attributes {dimension_semantics = [#tpu.dimension_semantics<parallel>, #tpu.dimension_semantics<parallel>, #tpu.dimension_semantics<arbitrary>], iteration_bounds = array<i64: 1, 1, 1>, scalar_prefetch = 0 : i64, scratch_operands = 1 : i64, tpu.core_type = #tpu.core_type<tc>, window_params = [{transform_indices = @transform_0, window_bounds = array<i64: 16, 32>}, {transform_indices = @transform_1, window_bounds = array<i64: 32, 64>}, {transform_indices = @transform_2, window_bounds = array<i64: 1, 64>}, {transform_indices = @transform_3, window_bounds = array<i64: 16, 64>}]} {
    %c0 = arith.constant 0 : index
    %c0_0 = arith.constant 0 : index
    %0 = vector.load %arg3[%c0, %c0_0] : memref<16x32xbf16, #tpu.memory_space<vmem>>, vector<16x32xbf16>
    %c0_1 = arith.constant 0 : index
    %c0_2 = arith.constant 0 : index
    %1 = vector.load %arg4[%c0_1, %c0_2] : memref<32x64xbf16, #tpu.memory_space<vmem>>, vector<32x64xbf16>
    %cst = arith.constant dense<0.000000e+00> : vector<16x64xf32>
    %2 = tpu.matmul %0, %1, %cst {dimension_numbers = #tpu.dot_dimension_numbers<[1], [0], [0], [1], [0, 0, 1, 1], [], []>} : vector<16x32xbf16>, vector<32x64xbf16>, vector<16x64xf32> -> vector<16x64xf32>
    %c0_i32 = arith.constant 0 : i32
    %3 = arith.cmpi eq, %arg2, %c0_i32 : i32
    %4 = arith.extui %3 : i1 to i32
    %c0_i32_3 = arith.constant 0 : i32
    %5 = arith.cmpi ne, %4, %c0_i32_3 : i32
    scf.if %5 {
      %c0_8 = arith.constant 0 : index
      %c0_9 = arith.constant 0 : index
      %12 = vector.load %arg7[%c0_8, %c0_9] : memref<16x64xf32, #tpu.memory_space<vmem>>, vector<16x64xf32>
      tpu.vector_store %arg7[%c0_8, %c0_9], %2 {strides = array<i32>} : memref<16x64xf32, #tpu.memory_space<vmem>>, vector<16x64xf32>,
    } else {
    }
    %c0_i32_4 = arith.constant 0 : i32
    %6 = arith.cmpi sgt, %arg2, %c0_i32_4 : i32
    %7 = arith.extui %6 : i1 to i32
    %c0_i32_5 = arith.constant 0 : i32
    %8 = arith.cmpi ne, %7, %c0_i32_5 : i32
    scf.if %8 {
      %c0_8 = arith.constant 0 : index
      %c0_9 = arith.constant 0 : index
      %12 = vector.load %arg7[%c0_8, %c0_9] : memref<16x64xf32, #tpu.memory_space<vmem>>, vector<16x64xf32>
      %13 = arith.addf %12, %2 : vector<16x64xf32>
      %c0_10 = arith.constant 0 : index
      %c0_11 = arith.constant 0 : index
      %14 = vector.load %arg7[%c0_10, %c0_11] : memref<16x64xf32, #tpu.memory_space<vmem>>, vector<16x64xf32>
      tpu.vector_store %arg7[%c0_10, %c0_11], %13 {strides = array<i32>} : memref<16x64xf32, #tpu.memory_space<vmem>>, vector<16x64xf32>,
    } else {
    }
    %c0_i32_6 = arith.constant 0 : i32
    %9 = arith.cmpi eq, %arg2, %c0_i32_6 : i32
    %10 = arith.extui %9 : i1 to i32
    %c0_i32_7 = arith.constant 0 : i32
    %11 = arith.cmpi ne, %10, %c0_i32_7 : i32
    scf.if %11 {
      %c0_8 = arith.constant 0 : index
      %c0_9 = arith.constant 0 : index
      %12 = vector.load %arg7[%c0_8, %c0_9] : memref<16x64xf32, #tpu.memory_space<vmem>>, vector<16x64xf32>
      %c0_10 = arith.constant 0 : index
      %c0_11 = arith.constant 0 : index
      %13 = vector.load %arg5[%c0_10, %c0_11] : memref<1x64xf32, #tpu.memory_space<vmem>>, vector<1x64xf32>
      %14 = vector.broadcast %13 : vector<1x64xf32> to vector<16x64xf32>
      %15 = arith.addf %12, %14 : vector<16x64xf32>
      %c0_12 = arith.constant 0 : index
      %c0_13 = arith.constant 0 : index
      %16 = vector.load %arg6[%c0_12, %c0_13] : memref<16x64xf32, #tpu.memory_space<vmem>>, vector<16x64xf32>
      tpu.vector_store %arg6[%c0_12, %c0_13], %15 {strides = array<i32>} : memref<16x64xf32, #tpu.memory_space<vmem>>, vector<16x64xf32>,
    } else {
    }
    return
  }
  func.func @transform_0(%arg0: i32, %arg1: i32, %arg2: i32) -> (i32, i32) {
    %c0_i32 = arith.constant 0 : i32
    return %arg0, %arg2 : i32, i32
  }
  func.func @transform_1(%arg0: i32, %arg1: i32, %arg2: i32) -> (i32, i32) {
    %c0_i32 = arith.constant 0 : i32
    return %arg2, %arg1 : i32, i32
  }
  func.func @transform_2(%arg0: i32, %arg1: i32, %arg2: i32) -> (i32, i32) {
    %c0_i32 = arith.constant 0 : i32
    %c0_i32_0 = arith.constant 0 : i32
    return %c0_i32, %arg1 : i32, i32
  }
  func.func @transform_3(%arg0: i32, %arg1: i32, %arg2: i32) -> (i32, i32) {
    %c0_i32 = arith.constant 0 : i32
    return %arg0, %arg1 : i32, i32
  }
}

</mosaic_0001>

<llo_original>
// kernel: _pallas_linear.1
$region0: #{_pallas_linear.1}
  #allocation0 [shape = 'u32[]', space=smem, size = 0x4, offset = 0x4, fixed_abs, tag = 'smem constant byte address 0x4 - core index']
  #allocation1 [shape = 'u32[144,128]{1,0:T(1,128)}', space=vmem, size = 0x12000, scoped, tag = 'internal scratch']
  #allocation2 [shape = 'f32[16,64]{1,0:T(8,128)}', space=vmem, size = 0x2000, scoped, tag = 'scratch operand']
  %s0 = inlined_call_operand.hbm [shape: bf16[16,32], index: 0, kind: input, shape index: {}]
  %s1 = inlined_call_operand.hbm [shape: bf16[32,64], index: 1, kind: input, shape index: {}]
  %s2 = inlined_call_operand.vmem [shape: f32[1,64], index: 2, kind: input, shape index: {}]
  %s3 = inlined_call_operand.hbm [shape: f32[16,64], index: 3, kind: output, shape index: {}]
  %s4 = sld [smem:[#allocation0]]
  $region42: #{_pallas_linear.1} parent=0
    _
  %s6 = ssub.s32 1, %s4
  %s7 = scalar_select 0, %s6, %s4
  $region1: #{_pallas_linear.1} parent=0
    #allocation3 [shape = 'u8[4096]{0}', space=vmem, size = 0x1000, scoped, tag = 'input window, operand 0, single buffered']
    #allocation4 [shape = 's32[1]{0}', space=sflag, size = 0x4, scoped, tag = 'scoped memory for _pallas_linear.1']
    #allocation5 [shape = 's32[1]{0}', space=sflag, size = 0x4, scoped, tag = 'scoped memory for _pallas_linear.1']
    #allocation6 [shape = 'u8[8192]{0}', space=vmem, size = 0x2000, scoped, tag = 'input window, operand 1, single buffered']
    #allocation7 [shape = 's32[1]{0}', space=sflag, size = 0x4, scoped, tag = 'scoped memory for _pallas_linear.1']
    #allocation8 [shape = 'u8[8192]{0}', space=vmem, size = 0x2000, scoped, tag = 'output window, operand 0, single buffered']
    %8 = vsyncpa [#allocation4], 0
    %9 = vsyncpa [#allocation7], 0
    %10 = vsyncpa [#allocation5], 0
    // Predicated region
    $region2: #{_pallas_linear.1} parent=1 // pred_check
      _
    $region3: #{_pallas_linear.1} parent=1 // pred_check_branch
      %12 = sbr.rel (0) target = $region5
    $region4: #{_pallas_linear.1} parent=1 // pred_region
      %s14 = ssub.s32 128, 128
      %15 = vsyncadd [#allocation4], %s14
      %s16 = sshll.u32 [#allocation3], 4
      %s17 = int_to_ptr.vmem [resolvable:$true] %s16
      %22 = dma.hbm_to_vmem [thread:$0]  %s0, 128, %s17, [#allocation4], 64, 64, 4
    $region5: #{_pallas_linear.1} parent=1 // pred_fallthru
      _
    // Predicated region
    $region6: #{_pallas_linear.1} parent=1 // pred_check
      _
    $region7: #{_pallas_linear.1} parent=1 // pred_check_branch
      %24 = sbr.rel (0) target = $region9
    $region8: #{_pallas_linear.1} parent=1 // pred_region
      %s26 = ssub.s32 256, 256
      %27 = vsyncadd [#allocation7], %s26
      %s28 = sshll.u32 [#allocation6], 4
      %s29 = int_to_ptr.vmem [resolvable:$true] %s28
      %34 = dma.hbm_to_vmem [thread:$0]  %s1, 256, %s29, [#allocation7], 64, 64, 4
    $region9: #{_pallas_linear.1} parent=1 // pred_fallthru
      _
    // Predicated region
    $region10: #{_pallas_linear.1} parent=1 // pred_check
      _
    $region11: #{_pallas_linear.1} parent=1 // pred_check_branch
      %36 = sbr.rel (0) target = $region13
    $region12: #{_pallas_linear.1} parent=1 // pred_region
      _
    $region13: #{_pallas_linear.1} parent=1 // pred_fallthru
      _
    // Predicated region
    $region14: #{_pallas_linear.1} parent=1 // pred_check
      _
    $region15: #{_pallas_linear.1} parent=1 // pred_check_branch
      %38 = sbr.rel (0) target = $region17
    $region16: #{_pallas_linear.1} parent=1 // pred_region
      %39 = dma.done [#allocation4], 128
    $region17: #{_pallas_linear.1} parent=1 // pred_fallthru
      _
    // Predicated region
    $region18: #{_pallas_linear.1} parent=1 // pred_check
      _
    $region19: #{_pallas_linear.1} parent=1 // pred_check_branch
      %41 = sbr.rel (0) target = $region21
    $region20: #{_pallas_linear.1} parent=1 // pred_region
      %42 = dma.done [#allocation7], 256
    $region21: #{_pallas_linear.1} parent=1 // pred_fallthru
      _
    %v44 = vld [vmem:[#allocation3] sm:$0xf]
    %v45 = vld [vmem:[#allocation3 + $0x4] sm:$0xf]
    %v46 = vld [vmem:[#allocation6] sm:$0xf]
    %v47 = vld [vmem:[#allocation6 + $0x4] sm:$0xf]
    %v48 = vld [vmem:[#allocation6 + $0x8] sm:$0xf]
    %v49 = vld [vmem:[#allocation6 + $0xc] sm:$0xf]
    %v52 = vunpack.c.l.b16 %v44
    %v53 = vunpack.c.l.b16 %v45
    %v54 = vpack.c.b16 %v53, %v52
    %v59 = vunpack.c.l.b16 %v46
    %v60 = vunpack.c.l.b16 %v47
    %v61 = vunpack.c.l.b16 %v48
    %v62 = vunpack.c.l.b16 %v49
    %v63 = vpack.c.b16 %v60, %v59
    %v64 = vpack.c.b16 %v62, %v61
    %vm67 = vcmask 261120
    %v69 = vsel %vm67, %v54, 0
    %71 = vmatprep.subr.bf16.mxu0 0
    %72 = vmatpush1.bf16.msra.mxu0 %v63
    %73 = vmatprep.subr.bf16.mxu0 0
    %74 = vmatpush1.bf16.msra.mxu0 %v64
    %75 = vmatprep.subr.bf16.mxu0 0
    %76 = vmatpush1.bf16.msra.mxu0 0
    %77 = vmatprep.subr.bf16.mxu0 0
    %78 = vmatpush1.bf16.msra.mxu0 0
    %79 = vmatprep.subr.bf16.mxu0 0
    %80 = vmatpush1.bf16.msra.mxu0 0
    %81 = vmatprep.subr.bf16.mxu0 0
    %82 = vmatpush1.bf16.msra.mxu0 0
    %83 = vmatprep.subr.bf16.mxu0 0
    %84 = vmatpush1.bf16.msra.mxu0 0
    %85 = vmatprep.subr.bf16.mxu0 0
    %86 = vmatpush1.bf16.msra.mxu0 0
    %87 = vmatprep.subr.bf16.mxu0 0
    %88 = vmatpush1.bf16.msra.mxu0 0
    %89 = vmatprep.subr.bf16.mxu0 0
    %90 = vmatpush1.bf16.msra.mxu0 0
    %91 = vmatprep.subr.bf16.mxu0 0
    %92 = vmatpush1.bf16.msra.mxu0 0
    %93 = vmatprep.subr.bf16.mxu0 0
    %94 = vmatpush1.bf16.msra.mxu0 0
    %95 = vmatprep.subr.bf16.mxu0 0
    %96 = vmatpush1.bf16.msra.mxu0 0
    %97 = vmatprep.subr.bf16.mxu0 0
    %98 = vmatpush1.bf16.msra.mxu0 0
    %99 = vmatprep.subr.bf16.mxu0 0
    %100 = vmatpush1.bf16.msra.mxu0 0
    %101 = vmatprep.subr.bf16.mxu0 0
    %102 = vmatpush1.bf16.msra.mxu0 0
    %103 = vmatprep.mubr.bf16.mxu0 0
    %104 = vmatmul.mubr.bf16.gmra.mrb[0].mxu0 %v69
    %v105 = vpop.f32.mrb[0].mxu0
    %v106 = vadd.f32 0.0, %v105
    %v107 = vpop.f32.mrb[0].mxu0
    %v108 = vpop.f32.mrb[0].mxu0
    %v109 = vadd.f32 0.0, %v108
    %v110 = vpop.f32.mrb[0].mxu0
    %111 = vdwg.mxu0
    %p112 = scmp.eq.s32.totalorder 0, 0
    // Predicated region
    $region22: #{_pallas_linear.1} parent=1 // pred_check
      %p113 = pneg %p112
    $region23: #{_pallas_linear.1} parent=1 // pred_check_branch
      %115 = sbr.rel (%p113) target = $region25
    $region24: #{_pallas_linear.1} parent=1 // pred_region
      %vm116 = vcmask 523264
      %117 = vst.msk [vmem:[#allocation2] sm:$0xff] %vm116, %v106
      %118 = vst.msk [vmem:[#allocation2 + $0x8] sm:$0xff] %vm116, %v109
    $region25: #{_pallas_linear.1} parent=1 // pred_fallthru
      _
    %p119 = scmp.gt.s32.totalorder 0, 0
    // Predicated region
    $region26: #{_pallas_linear.1} parent=1 // pred_check
      %p120 = pneg %p119
    $region27: #{_pallas_linear.1} parent=1 // pred_check_branch
      %122 = sbr.rel (%p120) target = $region29
    $region28: #{_pallas_linear.1} parent=1 // pred_region
      %v123 = vld [vmem:[#allocation2] sm:$0xff]
      %v124 = vld [vmem:[#allocation2 + $0x8] sm:$0xff]
      %v125 = vadd.f32 %v123, %v106
      %v126 = vadd.f32 %v124, %v109
      %vm127 = vcmask 523264
      %128 = vst.msk [vmem:[#allocation2] sm:$0xff] %vm127, %v125
      %129 = vst.msk [vmem:[#allocation2 + $0x8] sm:$0xff] %vm127, %v126
    $region29: #{_pallas_linear.1} parent=1 // pred_fallthru
      _
    // Predicated region
    $region30: #{_pallas_linear.1} parent=1 // pred_check
      %p130 = pneg %p112
    $region31: #{_pallas_linear.1} parent=1 // pred_check_branch
      %132 = sbr.rel (%p130) target = $region33
    $region32: #{_pallas_linear.1} parent=1 // pred_region
      %v133 = vld [vmem:[#allocation2] sm:$0xff]
      %v134 = vld [vmem:[#allocation2 + $0x8] sm:$0xff]
      %v135 = vld [vmem:[%s2] sm:$0x1]
      %v137 = vlaneseq
      %v138 = vshrl.u32 %v137, 7
      %v139 = vsub.s32 0, %v138
      %v140 = vrot.slane %v135, %v139
      %v142 = vadd.f32 %v133, %v140
      %v143 = vadd.f32 %v134, %v140
      %vm144 = vcmask 523264
      %145 = vst.msk [vmem:[#allocation8] sm:$0xff] %vm144, %v142
      %146 = vst.msk [vmem:[#allocation8 + $0x8] sm:$0xff] %vm144, %v143
    $region33: #{_pallas_linear.1} parent=1 // pred_fallthru
      _
    // Predicated region
    $region34: #{_pallas_linear.1} parent=1 // pred_check
      _
    $region35: #{_pallas_linear.1} parent=1 // pred_check_branch
      %148 = sbr.rel (0) target = $region37
    $region36: #{_pallas_linear.1} parent=1 // pred_region
      %s150 = ssub.s32 256, 256
      %151 = vsyncadd [#allocation5], %s150
      %s152 = sshll.u32 [#allocation8], 4
      %s153 = int_to_ptr.vmem [resolvable:$true] %s152
      %158 = dma.vmem_to_hbm [thread:$0]  %s153, 256, %s3, [#allocation5], 128, 128, 8
    $region37: #{_pallas_linear.1} parent=1 // pred_fallthru
      _
    // Predicated region
    $region38: #{_pallas_linear.1} parent=1 // pred_check
      _
    $region39: #{_pallas_linear.1} parent=1 // pred_check_branch
      %160 = sbr.rel (0) target = $region41
    $region40: #{_pallas_linear.1} parent=1 // pred_region
      %161 = dma.done [#allocation5], 256
    $region41: #{_pallas_linear.1} parent=1 // pred_fallthru
      _
    %162 = vsyncpa [#allocation4], 1
    %163 = vsyncpa [#allocation7], 1
    %164 = vsyncpa [#allocation5], 1

</llo_original>
